<compile_context>
chip_gen: v5e
topology: v5e:2x2
jax: 0.10.0
libtpu: 0.0.40
codegen_flags: <defaults>
</compile_context>

<pallas_src>
import jax
import jax.numpy as jnp
from jax.experimental import pallas as pl
from jax.experimental.pallas import tpu as pltpu

EPS = 1e-6          # inverse-distance regularizer
D2_FLOOR = 1e-12    # clamp for zero self-distance (diagonal)
_MIB = 1024 * 1024


def _pow_int(v, n):
    """v**n for small static integer n >= 1 (pure VPU multiplies)."""
    out = v
    for _ in range(n - 1):
        out = out * v
    return out


def _make_dist_pow(power):
    """dist**p = d2**(p/2), specialized for small integer / half-integer p."""
    p = float(power)
    half_p = 0.5 * p

    def dist_pow(d2):
        if half_p.is_integer() and 1.0 <= half_p <= 8.0:
            return _pow_int(d2, int(half_p))          # p = 2, 4, 6, 8: multiplies only
        if p.is_integer() and 1.0 <= p <= 8.0:        # odd p: d2^((p-1)/2) * sqrt(d2)
            k = int((p - 1.0) // 2.0)
            s = jnp.sqrt(d2)
            return s if k == 0 else _pow_int(d2, k) * s
        return jnp.exp(half_p * jnp.log(d2))          # general p: 2 EUP ops

    return dist_pow


def _make_idw_kernel(power, use_mxu_dist):
    """Builds the kernel body with the IDW power specialized at trace time."""
    dist_pow = _make_dist_pow(power)

    def _finish(d2, rhs, covar_ref, yint_ref):
        d2 = jnp.maximum(d2, D2_FLOOR)
        covar = pl.reciprocal(dist_pow(d2) + EPS, approx=True)       # (tm, N) f32
        # Store first, then feed the matvec from the output buffer: avoids a second
        # (tm, N) VMEM temp; with bf16 covar the MXU gets a native bf16 LHS.
        covar_ref[...] = covar.astype(covar_ref.dtype)
        nd = jnp.dot(covar_ref[...], rhs, preferred_element_type=jnp.float32)  # (tm, 2)
        yint_ref[...] = nd[:, 0:1] * pl.reciprocal(nd[:, 1:2], approx=True)

    if use_mxu_dist:
        def idw_kernel(xr_ref, xt_ref, rhs_ref, r2_ref, c2_ref, covar_ref, yint_ref):
            # d2 = ||xi||^2 + ||xj||^2 - 2*xi.xj ; cross term on the MXU (xr pre-scaled by -2).
            cross = jnp.dot(xr_ref[...], xt_ref[...],
                            preferred_element_type=jnp.float32,
                            precision=jax.lax.Precision.HIGHEST)     # (tm, N)
            d2 = r2_ref[...] + c2_ref[...] + cross
            tm, n_all = d2.shape
            row = pl.program_id(0) * tm + jax.lax.broadcasted_iota(jnp.int32, (tm, n_all), 0)
            col = jax.lax.broadcasted_iota(jnp.int32, (tm, n_all), 1)
            # Exact diagonal repair: cancellation would otherwise destroy covar_ii.
            d2 = jnp.where(row == col, D2_FLOOR, d2)
            _finish(d2, rhs_ref[...], covar_ref, yint_ref)
    else:
        def idw_kernel(xr_ref, xt_ref, rhs_ref, covar_ref, yint_ref):
            xr = xr_ref[...]                    # (tm, D)
            xt = xt_ref[...]                    # (D, N)
            tm = xr.shape[0]
            n_all = xt.shape[1]
            d2 = jnp.zeros((tm, n_all), dtype=jnp.float32)
            for k in range(xr.shape[1]):        # D is tiny & static -> exact per-feature diffs
                diff = xr[:, k:k + 1] - xt[k:k + 1, :]
                d2 = d2 + diff * diff
            _finish(d2, rhs_ref[...], covar_ref, yint_ref)

    return idw_kernel


def _tpu_vmem_capacity_bytes():
    try:
        info = pltpu.get_tpu_info()
        cap = getattr(info, "vmem_capacity_bytes", None)
        if cap:
            return int(cap)
    except Exception:
        pass
    return 64 * _MIB   # conservative (v7x-sized) fallback


def grad_adj_weighted_idw(x, y, raw_c, lengthscale, power, *, tm=None,
                          covar_dtype=jnp.bfloat16, use_mxu_dist=False):
    """Forward pass. x: (N, D), y: (N, 1), raw_c: (N, 1). Returns (y_int, covar)."""
    N, D = x.shape
    itemsize = jnp.dtype(covar_dtype).itemsize

    # ---- generation-aware VMEM budget (v5e/v6e: 128 MiB; v7x: 64 MiB/TC, 2 TCs) ----
    vmem_cap = _tpu_vmem_capacity_bytes()
    small_vmem = vmem_cap < 100 * _MIB
    if small_vmem:
        block_budget, vmem_ceiling = 24 * _MIB, 48 * _MIB
    else:
        block_budget, vmem_ceiling = 64 * _MIB, 96 * _MIB

    # ---- row-tile sizing: granule-aligned, VMEM-capped, >=2 blocks on 2-TC chips ----
    granule = 16 if itemsize < 4 else 8          # bf16 native tiling is (16, 128)
    if tm is None:
        tm = 1024
    cap_rows = max(granule, block_budget // max(1, 2 * N * itemsize))
    tm = max(granule, min(int(tm), N, int(cap_rows)))
    tm = max(granule, (tm // granule) * granule)
    if small_vmem and N >= 2 * granule:
        tm_half = (((N + 1) // 2 + granule - 1) // granule) * granule
        tm = min(tm, tm_half)                    # both TensorCores get a block
    n_blocks = -(-N // tm)
    M_pad = n_blocks * tm

    # ---- hoisted O(N) prep (glue; the N^2 hot path is in-kernel) ----
    xs = (x / lengthscale[None, :]).astype(jnp.float32)              # (N, D)
    xs_rows = jnp.pad(xs, ((0, M_pad - N), (0, 0))) if M_pad != N else xs
    c = jax.nn.sigmoid(raw_c.astype(jnp.float32)) + 1.0              # (N, 1)
    rhs = jnp.concatenate([y.astype(jnp.float32) * c, c], axis=1)    # (N, 2): [y*c, c]
    rhs = rhs.astype(covar_dtype)                                    # match MXU LHS dtype

    if use_mxu_dist:
        feat = 8                                                     # zero-pad features (K=8)
        xr_in = jnp.zeros((M_pad, feat), jnp.float32).at[:, :D].set(-2.0 * xs_rows)
        xt_in = jnp.zeros((feat, N), jnp.float32).at[:D, :].set(xs.T)
        r2 = jnp.sum(xs_rows * xs_rows, axis=1, keepdims=True)       # (M_pad, 1)
        c2 = jnp.sum(xs * xs, axis=1)[None, :]                       # (1, N)
        inputs = (xr_in, xt_in, rhs, r2, c2)
        in_specs = [
            pl.BlockSpec((tm, feat), lambda i: (i, 0)),
            pl.BlockSpec((feat, N), lambda i: (0, 0)),
            pl.BlockSpec((N, 2), lambda i: (0, 0)),
            pl.BlockSpec((tm, 1), lambda i: (i, 0)),
            pl.BlockSpec((1, N), lambda i: (0, 0)),
        ]
    else:
        feat = D
        inputs = (xs_rows, xs.T, rhs)
        in_specs = [
            pl.BlockSpec((tm, D), lambda i: (i, 0)),     # x row tile
            pl.BlockSpec((D, N), lambda i: (0, 0)),      # x (all points), transposed
            pl.BlockSpec((N, 2), lambda i: (0, 0)),      # [y*c, c]
        ]

    # Rough VMEM need (double-buffered blocks) -> explicit limit with headroom.
    est = 2 * (tm * N * itemsize + tm * 4 + tm * feat * 4 + feat * N * 4 + N * 2 * itemsize)
    if use_mxu_dist:
        est += 2 * (tm * 4 + N * 4)
    vmem_limit = int(min(max(est + est // 2, 16 * _MIB), vmem_ceiling))

    grid_spec = pltpu.PrefetchScalarGridSpec(
        num_scalar_prefetch=0,
        grid=(n_blocks,),
        in_specs=in_specs,
        out_specs=[
            pl.BlockSpec((tm, N), lambda i: (i, 0)),     # covar row block (lane-dense)
            pl.BlockSpec((tm, 1), lambda i: (i, 0)),     # y_int row block
        ],
    )

    covar_pad, yint_pad = pl.pallas_call(
        _make_idw_kernel(power, use_mxu_dist),
        out_shape=(
            jax.ShapeDtypeStruct((M_pad, N), covar_dtype),
            jax.ShapeDtypeStruct((M_pad, 1), jnp.float32),
        ),
        grid_spec=grid_spec,
        compiler_params=pltpu.CompilerParams(
            dimension_semantics=("parallel",),
            vmem_limit_bytes=vmem_limit,
        ),
    )(*inputs)

    if M_pad != N:
        covar_pad = covar_pad[:N]
        yint_pad = yint_pad[:N]
    return yint_pad, covar_pad


def ref_forward(x, y, raw_c, lengthscale, power):
    """Pure-JAX reference for the same forward pass."""
    xs = x / lengthscale[None, :]
    diff = xs[:, None, :] - xs[None, :, :]
    d2 = jnp.sum(diff * diff, axis=-1)
    dist = jnp.sqrt(jnp.maximum(d2, D2_FLOOR))
    covar = 1.0 / (dist ** power + EPS)
    c = jax.nn.sigmoid(raw_c) + 1.0
    y_int = (covar @ (y * c)) / (covar @ c)
    return y_int, covar


if __name__ == "__main__":
    key = jax.random.PRNGKey(0)
    k1, k2, k3 = jax.random.split(key, 3)

    N, D = 128, 3   # D = ard_num_dims = 3 (from the Interval constraint in __init__)
    x = jax.random.uniform(k1, (N, D), jnp.float32, minval=20.0, maxval=45.0)
    y = jax.random.normal(k2, (N, 1), jnp.float32)

    # raw_c ~ xavier_uniform on a (N, 1) tensor (deterministic synthetic init)
    bound = (6.0 / (N + 1)) ** 0.5
    raw_c = jax.random.uniform(k3, (N, 1), jnp.float32, minval=-bound, maxval=bound)

    # lengthscale initialized at the midpoint of the Interval constraint; power p = 2
    lengthscale = jnp.array([32.365, 32.365, 9.0], dtype=jnp.float32)

    y_ref, covar_ref = ref_forward(x, y, raw_c, lengthscale, 2.0)

    # 1) default path: bf16 covar output, exact per-feature distances
    y_bf, covar_bf = grad_adj_weighted_idw(x, y, raw_c, lengthscale, 2.0)
    jax.block_until_ready((y_bf, covar_bf))
    assert y_bf.shape == (N, 1) and covar_bf.shape == (N, N)
    assert covar_bf.dtype == jnp.bfloat16
    assert jnp.allclose(covar_bf.astype(jnp.float32), covar_ref, rtol=2e-2, atol=2e-2), \
        "covar (bf16) mismatch"
    assert jnp.allclose(y_bf, y_ref, rtol=2e-2, atol=2e-2), "y_int (bf16) mismatch"

    # 2) f32 covar output, tight tolerance
    y_32, covar_32 = grad_adj_weighted_idw(x, y, raw_c, lengthscale, 2.0,
                                           covar_dtype=jnp.float32)
    jax.block_until_ready((y_32, covar_32))
    assert jnp.allclose(covar_32, covar_ref, rtol=5e-3, atol=5e-3), "covar (f32) mismatch"
    assert jnp.allclose(y_32, y_ref, rtol=5e-3, atol=5e-3), "y_int (f32) mismatch"

    # 3) general-p specialization (p=3 -> d2*sqrt(d2), no exp/log) + ragged-N row padding
    y_ref3, covar_ref3 = ref_forward(x[:120], y[:120], raw_c[:120], lengthscale, 3.0)
    y_p3, covar_p3 = grad_adj_weighted_idw(x[:120], y[:120], raw_c[:120], lengthscale, 3.0,
                                           tm=64, covar_dtype=jnp.float32)
    jax.block_until_ready((y_p3, covar_p3))
    assert jnp.allclose(covar_p3, covar_ref3, rtol=5e-3, atol=5e-3), "covar (p=3) mismatch"
    assert jnp.allclose(y_p3, y_ref3, rtol=5e-3, atol=5e-3), "y_int (p=3) mismatch"

    # 4) flag-gated MXU-distance path (cross term on MXU, exact iota diagonal repair)
    y_mx, covar_mx = grad_adj_weighted_idw(x, y, raw_c, lengthscale, 2.0,
                                           covar_dtype=jnp.float32, use_mxu_dist=True)
    jax.block_until_ready((y_mx, covar_mx))
    assert jnp.allclose(covar_mx, covar_ref, rtol=2e-2, atol=2e-2), "covar (mxu) mismatch"
    assert jnp.allclose(y_mx, y_ref, rtol=1e-2, atol=1e-2), "y_int (mxu) mismatch"

    print("KERNEL_OK")
</pallas_src>

<mosaic_0001>
module attributes {stable_mosaic.version = 11 : i64} {
  func.func @idw_kernel(%arg0: i32, %arg1: memref<64x3xf32, #tpu.memory_space<vmem>>, %arg2: memref<3x128xf32, #tpu.memory_space<vmem>>, %arg3: memref<128x2xbf16, #tpu.memory_space<vmem>>, %arg4: memref<64x128xbf16, #tpu.memory_space<vmem>>, %arg5: memref<64x1xf32, #tpu.memory_space<vmem>>) attributes {dimension_semantics = [#tpu.dimension_semantics<parallel>], iteration_bounds = array<i64: 2>, scalar_prefetch = 0 : i64, scratch_operands = 0 : i64, tpu.core_type = #tpu.core_type<tc>, window_params = [{transform_indices = @transform_0, window_bounds = array<i64: 64, 3>}, {pipeline_mode = #tpu.pipeline_mode<synchronous>, transform_indices = @transform_1, window_bounds = array<i64: 3, 128>}, {pipeline_mode = #tpu.pipeline_mode<synchronous>, transform_indices = @transform_2, window_bounds = array<i64: 128, 2>}, {transform_indices = @transform_3, window_bounds = array<i64: 64, 128>}, {transform_indices = @transform_4, window_bounds = array<i64: 64, 1>}]} {
    %c0 = arith.constant 0 : index
    %c0_0 = arith.constant 0 : index
    %0 = vector.load %arg1[%c0, %c0_0] : memref<64x3xf32, #tpu.memory_space<vmem>>, vector<64x3xf32>
    %c0_1 = arith.constant 0 : index
    %c0_2 = arith.constant 0 : index
    %1 = vector.load %arg2[%c0_1, %c0_2] : memref<3x128xf32, #tpu.memory_space<vmem>>, vector<3x128xf32>
    %cst = arith.constant 0.000000e+00 : f32
    %2 = vector.broadcast %cst : f32 to vector<64x128xf32>
    %3 = vector.extract_strided_slice %0 {offsets = [0, 0], sizes = [64, 1], strides = [1, 1]} : vector<64x3xf32> to vector<64x1xf32>
    %4 = vector.extract_strided_slice %1 {offsets = [0, 0], sizes = [1, 128], strides = [1, 1]} : vector<3x128xf32> to vector<1x128xf32>
    %5 = vector.broadcast %3 : vector<64x1xf32> to vector<64x128xf32>
    %6 = vector.broadcast %4 : vector<1x128xf32> to vector<64x128xf32>
    %7 = arith.subf %5, %6 : vector<64x128xf32>
    %8 = arith.mulf %7, %7 : vector<64x128xf32>
    %9 = arith.addf %2, %8 : vector<64x128xf32>
    %10 = vector.extract_strided_slice %0 {offsets = [0, 1], sizes = [64, 1], strides = [1, 1]} : vector<64x3xf32> to vector<64x1xf32>
    %11 = vector.extract_strided_slice %1 {offsets = [1, 0], sizes = [1, 128], strides = [1, 1]} : vector<3x128xf32> to vector<1x128xf32>
    %12 = vector.broadcast %10 : vector<64x1xf32> to vector<64x128xf32>
    %13 = vector.broadcast %11 : vector<1x128xf32> to vector<64x128xf32>
    %14 = arith.subf %12, %13 : vector<64x128xf32>
    %15 = arith.mulf %14, %14 : vector<64x128xf32>
    %16 = arith.addf %9, %15 : vector<64x128xf32>
    %17 = vector.extract_strided_slice %0 {offsets = [0, 2], sizes = [64, 1], strides = [1, 1]} : vector<64x3xf32> to vector<64x1xf32>
    %18 = vector.extract_strided_slice %1 {offsets = [2, 0], sizes = [1, 128], strides = [1, 1]} : vector<3x128xf32> to vector<1x128xf32>
    %19 = vector.broadcast %17 : vector<64x1xf32> to vector<64x128xf32>
    %20 = vector.broadcast %18 : vector<1x128xf32> to vector<64x128xf32>
    %21 = arith.subf %19, %20 : vector<64x128xf32>
    %22 = arith.mulf %21, %21 : vector<64x128xf32>
    %23 = arith.addf %16, %22 : vector<64x128xf32>
    %c0_3 = arith.constant 0 : index
    %c0_4 = arith.constant 0 : index
    %24 = vector.load %arg3[%c0_3, %c0_4] : memref<128x2xbf16, #tpu.memory_space<vmem>>, vector<128x2xbf16>
    %cst_5 = arith.constant 9.99999996E-13 : f32
    %25 = vector.broadcast %cst_5 : f32 to vector<64x128xf32>
    %26 = arith.maximumf %23, %25 : vector<64x128xf32>
    %cst_6 = arith.constant 9.99999997E-7 : f32
    %27 = vector.broadcast %cst_6 : f32 to vector<64x128xf32>
    %28 = arith.addf %26, %27 : vector<64x128xf32>
    %29 = tpu.reciprocal %28 {approx = true} : vector<64x128xf32> -> vector<64x128xf32>
    %30 = arith.truncf %29 : vector<64x128xf32> to vector<64x128xbf16>
    %c0_7 = arith.constant 0 : index
    %c0_8 = arith.constant 0 : index
    %31 = vector.load %arg4[%c0_7, %c0_8] : memref<64x128xbf16, #tpu.memory_space<vmem>>, vector<64x128xbf16>
    tpu.vector_store %arg4[%c0_7, %c0_8], %30 {strides = array<i32>} : memref<64x128xbf16, #tpu.memory_space<vmem>>, vector<64x128xbf16>,
    %c0_9 = arith.constant 0 : index
    %c0_10 = arith.constant 0 : index
    %32 = vector.load %arg4[%c0_9, %c0_10] : memref<64x128xbf16, #tpu.memory_space<vmem>>, vector<64x128xbf16>
    %cst_11 = arith.constant dense<0.000000e+00> : vector<64x2xf32>
    %33 = tpu.matmul %32, %24, %cst_11 {dimension_numbers = #tpu.dot_dimension_numbers<[1], [0], [0], [1], [0, 0, 1, 1], [], []>} : vector<64x128xbf16>, vector<128x2xbf16>, vector<64x2xf32> -> vector<64x2xf32>
    %34 = vector.extract_strided_slice %33 {offsets = [0, 0], sizes = [64, 1], strides = [1, 1]} : vector<64x2xf32> to vector<64x1xf32>
    %35 = vector.extract_strided_slice %33 {offsets = [0, 1], sizes = [64, 1], strides = [1, 1]} : vector<64x2xf32> to vector<64x1xf32>
    %36 = tpu.reciprocal %35 {approx = true} : vector<64x1xf32> -> vector<64x1xf32>
    %37 = arith.mulf %34, %36 : vector<64x1xf32>
    %c0_12 = arith.constant 0 : index
    %c0_13 = arith.constant 0 : index
    %38 = vector.load %arg5[%c0_12, %c0_13] : memref<64x1xf32, #tpu.memory_space<vmem>>, vector<64x1xf32>
    tpu.vector_store %arg5[%c0_12, %c0_13], %37 {strides = array<i32>} : memref<64x1xf32, #tpu.memory_space<vmem>>, vector<64x1xf32>,
    return
  }
  func.func @transform_0(%arg0: i32) -> (i32, i32) {
    %c0_i32 = arith.constant 0 : i32
    %c0_i32_0 = arith.constant 0 : i32
    return %arg0, %c0_i32 : i32, i32
  }
  func.func @transform_1(%arg0: i32) -> (i32, i32) {
    %c0_i32 = arith.constant 0 : i32
    %c0_i32_0 = arith.constant 0 : i32
    %c0_i32_1 = arith.constant 0 : i32
    return %c0_i32, %c0_i32_0 : i32, i32
  }
  func.func @transform_2(%arg0: i32) -> (i32, i32) {
    %c0_i32 = arith.constant 0 : i32
    %c0_i32_0 = arith.constant 0 : i32
    %c0_i32_1 = arith.constant 0 : i32
    return %c0_i32, %c0_i32_0 : i32, i32
  }
  func.func @transform_3(%arg0: i32) -> (i32, i32) {
    %c0_i32 = arith.constant 0 : i32
    %c0_i32_0 = arith.constant 0 : i32
    return %arg0, %c0_i32 : i32, i32
  }
  func.func @transform_4(%arg0: i32) -> (i32, i32) {
    %c0_i32 = arith.constant 0 : i32
    %c0_i32_0 = arith.constant 0 : i32
    return %arg0, %c0_i32 : i32, i32
  }
}

</mosaic_0001>

<llo_original>
// kernel: tpu_custom_call.1
$region0: #{tpu_custom_call.1}
  #allocation0 [shape = 'u32[]', space=smem, size = 0x4, offset = 0x4, fixed_abs, tag = 'smem constant byte address 0x4 - core index']
  #allocation1 [shape = 'u32[72,128]{1,0:T(1,128)}', space=vmem, size = 0x9000, scoped, tag = 'internal scratch']
  %s0 = inlined_call_operand.vmem [shape: f32[128,3], index: 0, kind: input, shape index: {}]
  %s1 = inlined_call_operand.vmem [shape: f32[3,128], index: 1, kind: input, shape index: {}]
  %s2 = inlined_call_operand.vmem [shape: bf16[128,2], index: 2, kind: input, shape index: {}]
  %s3 = inlined_call_operand.hbm [shape: bf16[128,128], index: 3, kind: output, shape index: {0}]
  %s4 = inlined_call_operand.vmem [shape: f32[128,1], index: 4, kind: output, shape index: {1}]
  %5 = xla_tuple %s3, %s4
  %s6 = sld [smem:[#allocation0]]
  $region53: #{tpu_custom_call.1} parent=0
    _
  %s8 = ssub.s32 1, %s6
  %s9 = scalar_select 0, %s8, %s6
  $region1: #{tpu_custom_call.1} parent=0
    #allocation2 [shape = 'u8[32768]{0}', space=vmem, size = 0x8000, scoped, tag = 'output window, operand 0']
    #allocation3 [shape = 's32[2]{0}', space=sflag, size = 0x8, scoped, tag = 'scoped memory for tpu_custom_call.1']
    %10 = vsyncpa [#allocation3], 0
    %s11 = scalar_lea.sflag [#allocation3], 1
    %12 = vsyncpa %s11, 0
    loop: start=0, step=1, limit=4
    $region2: #{tpu_custom_call.1} parent=1 // loop_pre_header
      _
    $region3: #{tpu_custom_call.1} parent=1 // loop_header
      %s14 = sphi 0, %s18
      %p15 = scmp.ge.s32.totalorder %s14, 4
      %s24 = sphi 0, %s26
      %s27 = sphi 0, %s24
      %s28 = sphi 0, %s27
      %s44 = sphi 0, %s28
      %s48 = sphi 0, %s48
      %s50 = sphi 0, %s48
      %s51 = sphi 0, %s50
      %s65 = sphi 0, %s51
      %s69 = sphi 0, %s69
      %s71 = sphi 0, %s69
      %s72 = sphi 0, %s71
      %s86 = sphi 0, %s72
      %s92 = sphi 0, %s94
      %s95 = sphi 0, %s92
      %s96 = sphi 0, %s95
      %s112 = sphi 0, %s96
      %s118 = sphi 0, %s120
      %s121 = sphi 0, %s118
      %s122 = sphi 0, %s121
      %s138 = sphi 0, %s122
    $region4: #{tpu_custom_call.1} parent=1 // loop_header_branch
      %17 = sbr.rel (%p15) target = $region8
    $region5: #{tpu_custom_call.1} parent=1 // loop_body
      %s19 = ssub.s32 %s14, 1
      %s20 = ssub.s32 %s14, 2
      %s21 = sadd.s32 %s14, 1
      %s22 = ssub.s32 %s14, %s21
      %p23 = scmp.eq.s32.totalorder %s22, 0
      %s25 = sadd.s32 %s24, 1
      %s26 = scalar_select %p23, %s24, %s25
      %p29 = pneg %p23
      %p30 = scmp.eq.s32.totalorder %s14, 1
      %p31 = por %p29, %p30
      %p32 = scmp.ne.s32.totalorder %s24, %s27
      %p33 = scmp.eq.s32.totalorder %s14, 0
      %p34 = por %p32, %p33
      %p35 = scmp.ne.s32.totalorder %s24, %s27
      %p36 = scmp.eq.s32.totalorder %s19, 1
      %p37 = por %p35, %p36
      %p38 = scmp.ne.s32.totalorder %s27, %s28
      %p39 = scmp.eq.s32.totalorder %s19, 0
      %p40 = por %p38, %p39
      %p41 = scmp.ne.s32.totalorder %s27, %s28
      %p42 = scmp.eq.s32.totalorder %s20, 1
      %p43 = por %p41, %p42
      %p45 = scmp.ne.s32.totalorder %s28, %s44
      %p46 = scmp.eq.s32.totalorder %s20, 0
      %p47 = por %p45, %p46
      %s49 = sadd.s32 %s48, 1
      %p52 = scmp.eq.s32.totalorder %s14, 1
      %p53 = scmp.ne.s32.totalorder %s48, %s50
      %p54 = scmp.eq.s32.totalorder %s14, 0
      %p55 = por %p53, %p54
      %p56 = scmp.ne.s32.totalorder %s48, %s50
      %p57 = scmp.eq.s32.totalorder %s19, 1
      %p58 = por %p56, %p57
      %p59 = scmp.ne.s32.totalorder %s50, %s51
      %p60 = scmp.eq.s32.totalorder %s19, 0
      %p61 = por %p59, %p60
      %p62 = scmp.ne.s32.totalorder %s50, %s51
      %p63 = scmp.eq.s32.totalorder %s20, 1
      %p64 = por %p62, %p63
      %p66 = scmp.ne.s32.totalorder %s51, %s65
      %p67 = scmp.eq.s32.totalorder %s20, 0
      %p68 = por %p66, %p67
      %s70 = sadd.s32 %s69, 1
      %p73 = scmp.eq.s32.totalorder %s14, 1
      %p74 = scmp.ne.s32.totalorder %s69, %s71
      %p75 = scmp.eq.s32.totalorder %s14, 0
      %p76 = por %p74, %p75
      %p77 = scmp.ne.s32.totalorder %s69, %s71
      %p78 = scmp.eq.s32.totalorder %s19, 1
      %p79 = por %p77, %p78
      %p80 = scmp.ne.s32.totalorder %s71, %s72
      %p81 = scmp.eq.s32.totalorder %s19, 0
      %p82 = por %p80, %p81
      %p83 = scmp.ne.s32.totalorder %s71, %s72
      %p84 = scmp.eq.s32.totalorder %s20, 1
      %p85 = por %p83, %p84
      %p87 = scmp.ne.s32.totalorder %s72, %s86
      %p88 = scmp.eq.s32.totalorder %s20, 0
      %p89 = por %p87, %p88
      %s90 = ssub.s32 %s14, %s21
      %p91 = scmp.eq.s32.totalorder %s90, 0
      %s93 = sadd.s32 %s92, 1
      %s94 = scalar_select %p91, %s92, %s93
      %p97 = pneg %p91
      %p98 = scmp.eq.s32.totalorder %s14, 1
      %p99 = por %p97, %p98
      %p100 = scmp.ne.s32.totalorder %s92, %s95
      %p101 = scmp.eq.s32.totalorder %s14, 0
      %p102 = por %p100, %p101
      %p103 = scmp.ne.s32.totalorder %s92, %s95
      %p104 = scmp.eq.s32.totalorder %s19, 1
      %p105 = por %p103, %p104
      %p106 = scmp.ne.s32.totalorder %s95, %s96
      %p107 = scmp.eq.s32.totalorder %s19, 0
      %p108 = por %p106, %p107
      %p109 = scmp.ne.s32.totalorder %s95, %s96
      %p110 = scmp.eq.s32.totalorder %s20, 1
      %p111 = por %p109, %p110
      %p113 = scmp.ne.s32.totalorder %s96, %s112
      %p114 = scmp.eq.s32.totalorder %s20, 0
      %p115 = por %p113, %p114
      %s116 = ssub.s32 %s14, %s21
      %p117 = scmp.eq.s32.totalorder %s116, 0
      %s119 = sadd.s32 %s118, 1
      %s120 = scalar_select %p117, %s118, %s119
      %p123 = pneg %p117
      %p124 = scmp.eq.s32.totalorder %s14, 1
      %p125 = por %p123, %p124
      %p126 = scmp.ne.s32.totalorder %s118, %s121
      %p127 = scmp.eq.s32.totalorder %s14, 0
      %p128 = por %p126, %p127
      %p129 = scmp.ne.s32.totalorder %s118, %s121
      %p130 = scmp.eq.s32.totalorder %s19, 1
      %p131 = por %p129, %p130
      %p132 = scmp.ne.s32.totalorder %s121, %s122
      %p133 = scmp.eq.s32.totalorder %s19, 0
      %p134 = por %p132, %p133
      %p135 = scmp.ne.s32.totalorder %s121, %s122
      %p136 = scmp.eq.s32.totalorder %s20, 1
      %p137 = por %p135, %p136
      %p139 = scmp.ne.s32.totalorder %s122, %s138
      %p140 = scmp.eq.s32.totalorder %s20, 0
      %p141 = por %p139, %p140
      %p142 = scmp.le.s32.totalorder 1, %s14
      %p143 = scmp.lt.s32.totalorder %s14, 3
      %p144 = pnand %p142, %p143
      %p145 = pneg %p144
      // Predicated region
      $region9: #{tpu_custom_call.1} parent=5 // pred_check
        _
      $region10: #{tpu_custom_call.1} parent=5 // pred_check_branch
        %147 = sbr.rel (%p144) target = $region12
      $region11: #{tpu_custom_call.1} parent=5 // pred_region
        %s148 = ssub.s32 %s14, 1
        // Predicated region
        $region13: #{tpu_custom_call.1} parent=11 // pred_check
          %p149 = pneg %p61
        $region14: #{tpu_custom_call.1} parent=11 // pred_check_branch
          %151 = sbr.rel (%p149) target = $region16
        $region15: #{tpu_custom_call.1} parent=11 // pred_region
          _
        $region16: #{tpu_custom_call.1} parent=11 // pred_fallthru
          _
        // Predicated region
        $region17: #{tpu_custom_call.1} parent=11 // pred_check
          %p152 = pneg %p82
        $region18: #{tpu_custom_call.1} parent=11 // pred_check_branch
          %154 = sbr.rel (%p152) target = $region20
        $region19: #{tpu_custom_call.1} parent=11 // pred_region
          _
        $region20: #{tpu_custom_call.1} parent=11 // pred_fallthru
          _
      $region12: #{tpu_custom_call.1} parent=5 // pred_fallthru
        _
      %p155 = scmp.lt.s32.totalorder %s14, 2
      // Predicated region
      $region21: #{tpu_custom_call.1} parent=5 // pred_check
        %p156 = pneg %p155
      $region22: #{tpu_custom_call.1} parent=5 // pred_check_branch
        %158 = sbr.rel (%p156) target = $region24
      $region23: #{tpu_custom_call.1} parent=5 // pred_region
        // Predicated region
        $region25: #{tpu_custom_call.1} parent=23 // pred_check
          %p159 = pneg %p34
        $region26: #{tpu_custom_call.1} parent=23 // pred_check_branch
          %161 = sbr.rel (%p159) target = $region28
        $region27: #{tpu_custom_call.1} parent=23 // pred_region
          %s162 = smul.u32 8, %s14
          %p163 = scmp.lt.s32.totalorder %s162, 15
          %s164 = scalar_select %p163, %s162, 15
          %s165 = smul.addr %s164, 8
          %s166 = scalar_lea.vmem %s0, %s165
          %s167 = smul.u32 8, %s14
        $region28: #{tpu_custom_call.1} parent=23 // pred_fallthru
          _
      $region24: #{tpu_custom_call.1} parent=5 // pred_fallthru
        _
      %p168 = scmp.le.s32.totalorder 1, %s14
      %p169 = scmp.lt.s32.totalorder %s14, 3
      %p170 = pnand %p168, %p169
      %p171 = pneg %p170
      // Predicated region
      $region29: #{tpu_custom_call.1} parent=5 // pred_check
        _
      $region30: #{tpu_custom_call.1} parent=5 // pred_check_branch
        %173 = sbr.rel (%p170) target = $region32
      $region31: #{tpu_custom_call.1} parent=5 // pred_region
        %s174 = ssub.s32 %s14, 1
        %s175 = smul.u32 8, %s19
        %p176 = scmp.lt.s32.totalorder %s175, 15
        %s177 = scalar_select %p176, %s175, 15
        %s178 = smul.addr %s177, 8
        %s179 = scalar_lea.vmem %s0, %s178
        %p180 = pneg %p40
        %p181 = pneg %p37
        %p182 = pneg %p61
        %p183 = pneg %p58
        %p184 = pneg %p82
        %p185 = pneg %p79
        %p186 = pneg %p108
        %p187 = pneg %p105
        %s188 = sand.u32 %s95, 1
        %s189 = scalar_lea.sflag [#allocation3], %s188
        %s190 = sand.u32 %s95, 1
        %s191 = smul.addr %s190, 32
        %s192 = scalar_lea.vmem [#allocation2], %s191
        %p193 = pneg %p134
        %p194 = pneg %p131
        %s195 = smul.u32 8, %s19
        %p196 = scmp.lt.s32.totalorder %s195, 15
        %s197 = scalar_select %p196, %s195, 15
        %s198 = smul.addr %s197, 8
        %s199 = scalar_lea.vmem %s4, %s198
        %s200 = smul.u32 8, %s19
        %p201 = scmp.lt.s32.totalorder %s200, 15
        %s202 = scalar_select %p201, %s200, 15
        %s203 = smul.addr %s202, 8
        %s204 = scalar_lea.vmem %s0, %s203
        %s205 = smul.u32 8, %s19
        %s206 = smul.u32 8, %s19
        %s207 = smul.u32 8, %s19
        %p208 = scmp.lt.s32.totalorder %s207, 15
        %s209 = scalar_select %p208, %s207, 15
        %s210 = smul.addr %s209, 8
        %s211 = scalar_lea.vmem %s4, %s210
        %s212 = smul.u32 8, %s19
        %v213 = vld [vmem:[%s204] sm:$0xff]
        %v214 = vld [vmem:[%s204 + $0x8] sm:$0xff]
        %v215 = vld [vmem:[%s204 + $0x10] sm:$0xff]
        %v216 = vld [vmem:[%s204 + $0x18] sm:$0xff]
        %v217 = vld [vmem:[%s204 + $0x20] sm:$0xff]
        %v218 = vld [vmem:[%s204 + $0x28] sm:$0xff]
        %v219 = vld [vmem:[%s204 + $0x30] sm:$0xff]
        %v220 = vld [vmem:[%s204 + $0x38] sm:$0xff]
        %v221 = vld [vmem:[%s1] sm:$0x7]
        %223 = vset.pattern.permute.xlu0 0
        %224 = vperm.xlu0 %223, %v213
        %v225 = vpop.permute.xlu0 %224
        %228 = vset.pattern.permute.xlu0 0
        %229 = vperm.xlu0 %228, %v214
        %v230 = vpop.permute.xlu0 %229
        %233 = vset.pattern.permute.xlu0 0
        %234 = vperm.xlu0 %233, %v215
        %v235 = vpop.permute.xlu0 %234
        %238 = vset.pattern.permute.xlu0 0
        %239 = vperm.xlu0 %238, %v216
        %v240 = vpop.permute.xlu0 %239
        %243 = vset.pattern.permute.xlu0 0
        %244 = vperm.xlu0 %243, %v217
        %v245 = vpop.permute.xlu0 %244
        %248 = vset.pattern.permute.xlu0 0
        %249 = vperm.xlu0 %248, %v218
        %v250 = vpop.permute.xlu0 %249
        %253 = vset.pattern.permute.xlu0 0
        %254 = vperm.xlu0 %253, %v219
        %v255 = vpop.permute.xlu0 %254
        %258 = vset.pattern.permute.xlu0 0
        %259 = vperm.xlu0 %258, %v220
        %v260 = vpop.permute.xlu0 %259
        %v262 = vperm.slane %v221, 0
        %v263 = vsub.f32 %v225, %v262
        %v264 = vsub.f32 %v230, %v262
        %v265 = vsub.f32 %v235, %v262
        %v266 = vsub.f32 %v240, %v262
        %v267 = vsub.f32 %v245, %v262
        %v268 = vsub.f32 %v250, %v262
        %v269 = vsub.f32 %v255, %v262
        %v270 = vsub.f32 %v260, %v262
        %v271 = vmul.f32 %v263, %v263
        %v272 = vmul.f32 %v264, %v264
        %v273 = vmul.f32 %v265, %v265
        %v274 = vmul.f32 %v266, %v266
        %v275 = vmul.f32 %v267, %v267
        %v276 = vmul.f32 %v268, %v268
        %v277 = vmul.f32 %v269, %v269
        %v278 = vmul.f32 %v270, %v270
        %v279 = vadd.f32 %v271, 0.0
        %v280 = vadd.f32 %v272, 0.0
        %v281 = vadd.f32 %v273, 0.0
        %v282 = vadd.f32 %v274, 0.0
        %v283 = vadd.f32 %v275, 0.0
        %v284 = vadd.f32 %v276, 0.0
        %v285 = vadd.f32 %v277, 0.0
        %v286 = vadd.f32 %v278, 0.0
        %287 = vset.pattern.permute.xlu0 1
        %288 = vperm.xlu0 %287, %v213
        %v289 = vpop.permute.xlu0 %288
        %291 = vset.pattern.permute.xlu0 1
        %292 = vperm.xlu0 %291, %v214
        %v293 = vpop.permute.xlu0 %292
        %295 = vset.pattern.permute.xlu0 1
        %296 = vperm.xlu0 %295, %v215
        %v297 = vpop.permute.xlu0 %296
        %299 = vset.pattern.permute.xlu0 1
        %300 = vperm.xlu0 %299, %v216
        %v301 = vpop.permute.xlu0 %300
        %303 = vset.pattern.permute.xlu0 1
        %304 = vperm.xlu0 %303, %v217
        %v305 = vpop.permute.xlu0 %304
        %307 = vset.pattern.permute.xlu0 1
        %308 = vperm.xlu0 %307, %v218
        %v309 = vpop.permute.xlu0 %308
        %311 = vset.pattern.permute.xlu0 1
        %312 = vperm.xlu0 %311, %v219
        %v313 = vpop.permute.xlu0 %312
        %315 = vset.pattern.permute.xlu0 1
        %316 = vperm.xlu0 %315, %v220
        %v317 = vpop.permute.xlu0 %316
        %v319 = vperm.slane %v221, 1
        %v320 = vsub.f32 %v289, %v319
        %v321 = vsub.f32 %v293, %v319
        %v322 = vsub.f32 %v297, %v319
        %v323 = vsub.f32 %v301, %v319
        %v324 = vsub.f32 %v305, %v319
        %v325 = vsub.f32 %v309, %v319
        %v326 = vsub.f32 %v313, %v319
        %v327 = vsub.f32 %v317, %v319
        %v328 = vmul.f32 %v320, %v320
        %v329 = vmul.f32 %v321, %v321
        %v330 = vmul.f32 %v322, %v322
        %v331 = vmul.f32 %v323, %v323
        %v332 = vmul.f32 %v324, %v324
        %v333 = vmul.f32 %v325, %v325
        %v334 = vmul.f32 %v326, %v326
        %v335 = vmul.f32 %v327, %v327
        %v336 = vadd.f32 %v279, %v328
        %v337 = vadd.f32 %v280, %v329
        %v338 = vadd.f32 %v281, %v330
        %v339 = vadd.f32 %v282, %v331
        %v340 = vadd.f32 %v283, %v332
        %v341 = vadd.f32 %v284, %v333
        %v342 = vadd.f32 %v285, %v334
        %v343 = vadd.f32 %v286, %v335
        %344 = vset.pattern.permute.xlu0 2
        %345 = vperm.xlu0 %344, %v213
        %v346 = vpop.permute.xlu0 %345
        %348 = vset.pattern.permute.xlu0 2
        %349 = vperm.xlu0 %348, %v214
        %v350 = vpop.permute.xlu0 %349
        %352 = vset.pattern.permute.xlu0 2
        %353 = vperm.xlu0 %352, %v215
        %v354 = vpop.permute.xlu0 %353
        %356 = vset.pattern.permute.xlu0 2
        %357 = vperm.xlu0 %356, %v216
        %v358 = vpop.permute.xlu0 %357
        %360 = vset.pattern.permute.xlu0 2
        %361 = vperm.xlu0 %360, %v217
        %v362 = vpop.permute.xlu0 %361
        %364 = vset.pattern.permute.xlu0 2
        %365 = vperm.xlu0 %364, %v218
        %v366 = vpop.permute.xlu0 %365
        %368 = vset.pattern.permute.xlu0 2
        %369 = vperm.xlu0 %368, %v219
        %v370 = vpop.permute.xlu0 %369
        %372 = vset.pattern.permute.xlu0 2
        %373 = vperm.xlu0 %372, %v220
        %v374 = vpop.permute.xlu0 %373
        %v376 = vperm.slane %v221, 2
        %v377 = vsub.f32 %v346, %v376
        %v378 = vsub.f32 %v350, %v376
        %v379 = vsub.f32 %v354, %v376
        %v380 = vsub.f32 %v358, %v376
        %v381 = vsub.f32 %v362, %v376
        %v382 = vsub.f32 %v366, %v376
        %v383 = vsub.f32 %v370, %v376
        %v384 = vsub.f32 %v374, %v376
        %v385 = vmul.f32 %v377, %v377
        %v386 = vmul.f32 %v378, %v378
        %v387 = vmul.f32 %v379, %v379
        %v388 = vmul.f32 %v380, %v380
        %v389 = vmul.f32 %v381, %v381
        %v390 = vmul.f32 %v382, %v382
        %v391 = vmul.f32 %v383, %v383
        %v392 = vmul.f32 %v384, %v384
        %v393 = vadd.f32 %v336, %v385
        %v394 = vadd.f32 %v337, %v386
        %v395 = vadd.f32 %v338, %v387
        %v396 = vadd.f32 %v339, %v388
        %v397 = vadd.f32 %v340, %v389
        %v398 = vadd.f32 %v341, %v390
        %v399 = vadd.f32 %v342, %v391
        %v400 = vadd.f32 %v343, %v392
        %v401 = vld [vmem:[%s2] sm:$0xf]
        %v402 = vld [vmem:[%s2 + $0x4] sm:$0xf]
        %v403 = vld [vmem:[%s2 + $0x8] sm:$0xf]
        %v404 = vld [vmem:[%s2 + $0xc] sm:$0xf]
        %v405 = vld [vmem:[%s2 + $0x10] sm:$0xf]
        %v406 = vld [vmem:[%s2 + $0x14] sm:$0xf]
        %v407 = vld [vmem:[%s2 + $0x18] sm:$0xf]
        %v408 = vld [vmem:[%s2 + $0x1c] sm:$0xf]
        %v409 = vld [vmem:[%s2 + $0x20] sm:$0xf]
        %v410 = vld [vmem:[%s2 + $0x24] sm:$0xf]
        %v411 = vld [vmem:[%s2 + $0x28] sm:$0xf]
        %v412 = vld [vmem:[%s2 + $0x2c] sm:$0xf]
        %v413 = vld [vmem:[%s2 + $0x30] sm:$0xf]
        %v414 = vld [vmem:[%s2 + $0x34] sm:$0xf]
        %v415 = vld [vmem:[%s2 + $0x38] sm:$0xf]
        %v416 = vld [vmem:[%s2 + $0x3c] sm:$0xf]
        %v417 = vmax.f32 %v393, 1e-12
        %v418 = vmax.f32 %v394, 1e-12
        %v419 = vmax.f32 %v395, 1e-12
        %v420 = vmax.f32 %v396, 1e-12
        %v421 = vmax.f32 %v397, 1e-12
        %v422 = vmax.f32 %v398, 1e-12
        %v423 = vmax.f32 %v399, 1e-12
        %v424 = vmax.f32 %v400, 1e-12
        %v425 = vadd.f32 %v417, 1e-06
        %v426 = vadd.f32 %v418, 1e-06
        %v427 = vadd.f32 %v419, 1e-06
        %v428 = vadd.f32 %v420, 1e-06
        %v429 = vadd.f32 %v421, 1e-06
        %v430 = vadd.f32 %v422, 1e-06
        %v431 = vadd.f32 %v423, 1e-06
        %v432 = vadd.f32 %v424, 1e-06
        %v433 = vrcp.pop %v425
        %v434 = vrcp.pop %v426
        %v435 = vrcp.pop %v427
        %v436 = vrcp.pop %v428
        %v437 = vrcp.pop %v429
        %v438 = vrcp.pop %v430
        %v439 = vrcp.pop %v431
        %v440 = vrcp.pop %v432
        %v441 = vpack.c.bf16 %v433, %v433
        %v442 = vpack.c.bf16 %v434, %v434
        %v443 = vpack.c.bf16 %v435, %v435
        %v444 = vpack.c.bf16 %v436, %v436
        %v445 = vpack.c.bf16 %v437, %v437
        %v446 = vpack.c.bf16 %v438, %v438
        %v447 = vpack.c.bf16 %v439, %v439
        %v448 = vpack.c.bf16 %v440, %v440
        %449 = vst [vmem:[%s192] sm:$0xf] %v441
        %450 = vst [vmem:[%s192 + $0x4] sm:$0xf] %v442
        %451 = vst [vmem:[%s192 + $0x8] sm:$0xf] %v443
        %452 = vst [vmem:[%s192 + $0xc] sm:$0xf] %v444
        %453 = vst [vmem:[%s192 + $0x10] sm:$0xf] %v445
        %454 = vst [vmem:[%s192 + $0x14] sm:$0xf] %v446
        %455 = vst [vmem:[%s192 + $0x18] sm:$0xf] %v447
        %456 = vst [vmem:[%s192 + $0x1c] sm:$0xf] %v448
        %v457 = vld [vmem:[%s192] sm:$0xf]
        %v458 = vld [vmem:[%s192 + $0x4] sm:$0xf]
        %v459 = vld [vmem:[%s192 + $0x8] sm:$0xf]
        %v460 = vld [vmem:[%s192 + $0xc] sm:$0xf]
        %v461 = vld [vmem:[%s192 + $0x10] sm:$0xf]
        %v462 = vld [vmem:[%s192 + $0x14] sm:$0xf]
        %v463 = vld [vmem:[%s192 + $0x18] sm:$0xf]
        %v464 = vld [vmem:[%s192 + $0x1c] sm:$0xf]
        %v473 = vunpack.c.l.b16 %v457
        %v474 = vunpack.c.l.b16 %v458
        %v475 = vunpack.c.l.b16 %v459
        %v476 = vunpack.c.l.b16 %v460
        %v477 = vunpack.c.l.b16 %v461
        %v478 = vunpack.c.l.b16 %v462
        %v479 = vunpack.c.l.b16 %v463
        %v480 = vunpack.c.l.b16 %v464
        %v481 = vpack.c.b16 %v474, %v473
        %v482 = vpack.c.b16 %v476, %v475
        %v483 = vpack.c.b16 %v478, %v477
        %v484 = vpack.c.b16 %v480, %v479
        %v505 = vunpack.c.l.b16 %v401
        %v506 = vunpack.c.l.b16 %v402
        %v507 = vunpack.c.l.b16 %v403
        %v508 = vunpack.c.l.b16 %v404
        %v509 = vunpack.c.l.b16 %v405
        %v510 = vunpack.c.l.b16 %v406
        %v511 = vunpack.c.l.b16 %v407
        %v512 = vunpack.c.l.b16 %v408
        %v513 = vunpack.c.l.b16 %v409
        %v514 = vunpack.c.l.b16 %v410
        %v515 = vunpack.c.l.b16 %v411
        %v516 = vunpack.c.l.b16 %v412
        %v517 = vunpack.c.l.b16 %v413
        %v518 = vunpack.c.l.b16 %v414
        %v519 = vunpack.c.l.b16 %v415
        %v520 = vunpack.c.l.b16 %v416
        %v521 = vpack.c.b16 %v506, %v505
        %v522 = vpack.c.b16 %v508, %v507
        %v523 = vpack.c.b16 %v510, %v509
        %v524 = vpack.c.b16 %v512, %v511
        %v525 = vpack.c.b16 %v514, %v513
        %v526 = vpack.c.b16 %v516, %v515
        %v527 = vpack.c.b16 %v518, %v517
        %v528 = vpack.c.b16 %v520, %v519
        %537 = vmatpush.bf16.msra.mxu0 %v528
        %538 = vmatpush.bf16.msra.mxu0 %v527
        %539 = vmatpush.bf16.msra.mxu0 %v526
        %540 = vmatpush.bf16.msra.mxu0 %v525
        %541 = vmatpush.bf16.msra.mxu0 %v524
        %542 = vmatpush.bf16.msra.mxu0 %v523
        %543 = vmatpush.bf16.msra.mxu0 %v522
        %544 = vmatpush.bf16.msra.mxu0 %v521
        %545 = vmatmul.bf16.gmra.mxu0 %v481
        %v546 = vpop.f32.mrf.mxu0
        %v547 = vadd.f32 0.0, %v546
        %v548 = vpop.f32.mrf.mxu0
        %v549 = vadd.f32 0.0, %v548
        %550 = vmatmul.bf16.gmra.mxu0 %v482
        %v551 = vpop.f32.mrf.mxu0
        %v552 = vadd.f32 0.0, %v551
        %v553 = vpop.f32.mrf.mxu0
        %v554 = vadd.f32 0.0, %v553
        %555 = vmatmul.bf16.gmra.mxu0 %v483
        %v556 = vpop.f32.mrf.mxu0
        %v557 = vadd.f32 0.0, %v556
        %v558 = vpop.f32.mrf.mxu0
        %v559 = vadd.f32 0.0, %v558
        %560 = vmatmul.bf16.gmra.mxu0 %v484
        %v561 = vpop.f32.mrf.mxu0
        %v562 = vadd.f32 0.0, %v561
        %v563 = vpop.f32.mrf.mxu0
        %v564 = vadd.f32 0.0, %v563
        %565 = vdwg.mxu0
        %v566 = vrcp.pop %v547
        %v567 = vrcp.pop %v549
        %v568 = vrcp.pop %v552
        %v569 = vrcp.pop %v554
        %v570 = vrcp.pop %v557
        %v571 = vrcp.pop %v559
        %v572 = vrcp.pop %v562
        %v573 = vrcp.pop %v564
        %582 = vrot.lane.b32.xlu0 %v566, 127
        %v583 = vpop.permute.xlu0 %582
        %584 = vrot.lane.b32.xlu0 %v567, 127
        %v585 = vpop.permute.xlu0 %584
        %586 = vrot.lane.b32.xlu0 %v568, 127
        %v587 = vpop.permute.xlu0 %586
        %588 = vrot.lane.b32.xlu0 %v569, 127
        %v589 = vpop.permute.xlu0 %588
        %590 = vrot.lane.b32.xlu0 %v570, 127
        %v591 = vpop.permute.xlu0 %590
        %592 = vrot.lane.b32.xlu0 %v571, 127
        %v593 = vpop.permute.xlu0 %592
        %594 = vrot.lane.b32.xlu0 %v572, 127
        %v595 = vpop.permute.xlu0 %594
        %596 = vrot.lane.b32.xlu0 %v573, 127
        %v597 = vpop.permute.xlu0 %596
        %v606 = vmul.f32 %v547, %v583
        %v607 = vmul.f32 %v549, %v585
        %v608 = vmul.f32 %v552, %v587
        %v609 = vmul.f32 %v554, %v589
        %v610 = vmul.f32 %v557, %v591
        %v611 = vmul.f32 %v559, %v593
        %v612 = vmul.f32 %v562, %v595
        %v613 = vmul.f32 %v564, %v597
        %vm614 = vcmask 7168
        %615 = vst.msk [vmem:[%s211] sm:$0xff] %vm614, %v606
        %616 = vst.msk [vmem:[%s211 + $0x8] sm:$0xff] %vm614, %v607
        %617 = vst.msk [vmem:[%s211 + $0x10] sm:$0xff] %vm614, %v608
        %618 = vst.msk [vmem:[%s211 + $0x18] sm:$0xff] %vm614, %v609
        %619 = vst.msk [vmem:[%s211 + $0x20] sm:$0xff] %vm614, %v610
        %620 = vst.msk [vmem:[%s211 + $0x28] sm:$0xff] %vm614, %v611
        %621 = vst.msk [vmem:[%s211 + $0x30] sm:$0xff] %vm614, %v612
        %622 = vst.msk [vmem:[%s211 + $0x38] sm:$0xff] %vm614, %v613
        %s623 = sand.u32 %s95, 1
        %s624 = scalar_lea.sflag [#allocation3], %s623
        %s625 = sand.u32 %s95, 1
        %s626 = smul.addr %s625, 32
        %s627 = scalar_lea.vmem [#allocation2], %s626
        %s628 = smul.u32 8, %s19
        %p629 = scmp.lt.s32.totalorder %s628, 15
        %s630 = scalar_select %p629, %s628, 15
        %s631 = smul.addr %s630, 8
        %s632 = scalar_lea.vmem %s4, %s631
        // Predicated region
        $region33: #{tpu_custom_call.1} parent=31 // pred_check
          %p633 = pneg %p105
        $region34: #{tpu_custom_call.1} parent=31 // pred_check_branch
          %635 = sbr.rel (%p633) target = $region36
        $region35: #{tpu_custom_call.1} parent=31 // pred_region
          %s636 = smul.u32 8, %s19
          %638 = vsyncadd %s624, 0
          %s639 = smul.addr %s636, 4
          %s640 = scalar_lea.hbm %s3, %s639
          %s641 = sshll.u32 %s627, 4
          %s642 = int_to_ptr.vmem [resolvable:$true] %s641
          %s643 = sshll.u32 %s640, 4
          %s644 = int_to_ptr.hbm [resolvable:$true] %s643
          %649 = dma.vmem_to_hbm [thread:$0]  %s642, 512, %s644, %s624, 64, 64, 4
        $region36: #{tpu_custom_call.1} parent=31 // pred_fallthru
          _
        // Predicated region
        $region37: #{tpu_custom_call.1} parent=31 // pred_check
          %p650 = pneg %p131
        $region38: #{tpu_custom_call.1} parent=31 // pred_check_branch
          %652 = sbr.rel (%p650) target = $region40
        $region39: #{tpu_custom_call.1} parent=31 // pred_region
          %s653 = smul.u32 8, %s19
        $region40: #{tpu_custom_call.1} parent=31 // pred_fallthru
          _
      $region32: #{tpu_custom_call.1} parent=5 // pred_fallthru
        _
      %p654 = scmp.le.s32.totalorder 2, %s14
      // Predicated region
      $region41: #{tpu_custom_call.1} parent=5 // pred_check
        %p655 = pneg %p654
      $region42: #{tpu_custom_call.1} parent=5 // pred_check_branch
        %657 = sbr.rel (%p655) target = $region44
      $region43: #{tpu_custom_call.1} parent=5 // pred_region
        %s658 = ssub.s32 %s14, 2
        // Predicated region
        $region45: #{tpu_custom_call.1} parent=43 // pred_check
          %p659 = pneg %p111
        $region46: #{tpu_custom_call.1} parent=43 // pred_check_branch
          %661 = sbr.rel (%p659) target = $region48
        $region47: #{tpu_custom_call.1} parent=43 // pred_region
          %s662 = sand.u32 %s96, 1
          %s663 = scalar_lea.sflag [#allocation3], %s662
          %s664 = sand.u32 %s96, 1
          %s665 = smul.addr %s664, 32
          %s666 = scalar_lea.vmem [#allocation2], %s665
          %668 = dma.done %s663, 512
        $region48: #{tpu_custom_call.1} parent=43 // pred_fallthru
          _
        // Predicated region
        $region49: #{tpu_custom_call.1} parent=43 // pred_check
          %p669 = pneg %p137
        $region50: #{tpu_custom_call.1} parent=43 // pred_check_branch
          %671 = sbr.rel (%p669) target = $region52
        $region51: #{tpu_custom_call.1} parent=43 // pred_region
          %s672 = smul.u32 8, %s20
          %p673 = scmp.lt.s32.totalorder %s672, 15
          %s674 = scalar_select %p673, %s672, 15
          %s675 = smul.addr %s674, 8
          %s676 = scalar_lea.vmem %s4, %s675
        $region52: #{tpu_custom_call.1} parent=43 // pred_fallthru
          _
      $region44: #{tpu_custom_call.1} parent=5 // pred_fallthru
        _
    $region6: #{tpu_custom_call.1} parent=1 // loop_footer
      %s18 = sadd.s32 1, %s14
    $region7: #{tpu_custom_call.1} parent=1 // loop_footer_branch
      %13 = sbr.rel target = $region3
    $region8: #{tpu_custom_call.1} parent=1 // loop_exit
      _
    %677 = vsyncpa [#allocation3], 1
    %s678 = scalar_lea.sflag [#allocation3], 1
    %679 = vsyncpa %s678, 1

</llo_original>
